<compile_context>
chip_gen: v5e
topology: v5e:2x2
jax: 0.10.0
libtpu: 0.0.40
codegen_flags: <defaults>
</compile_context>

<pallas_src>
import math
import functools

import jax
import jax.numpy as jnp
from jax.experimental import pallas as pl
from jax.experimental.pallas import tpu as pltpu

HIDDEN = 500       # logical hidden size (nn.Linear(n_feature, 500))
HIDDEN_PAD = 512   # zero-padded to a multiple of 128 lanes


def _round_up(x, m):
    return (x + m - 1) // m * m


def mlp_kernel(x_ref, w1_ref, b1_ref, w2_ref, b2_ref, o_ref):
    """One batch tile: o[0, :] = relu(x @ W1 + b1) . w2 + b2 (lane-dense out).

    x_ref  : (TB, F)   VMEM, streamed per grid step
    w1_ref : (F, Hp)   VMEM, resident across grid steps
    b1_ref : (1, Hp)   VMEM, resident
    w2_ref : (1, Hp)   VMEM, resident (second layer as a row vector)
    b2_ref : (1, 1)    SMEM scalar
    o_ref  : (1, TB)   VMEM, lane-dense output block
    """
    # Hidden layer on the MXU, f32 accumulation; bias + ReLU on the VPU.
    h = jnp.dot(x_ref[...], w1_ref[...], preferred_element_type=jnp.float32)
    h = jnp.maximum(h + b1_ref[...], 0.0)

    # Output layer (N=1): VPU multiply + cross-lane reduce instead of an MXU
    # matmul with 1 useful column.  Padded hidden lanes contribute exactly 0.
    out = jnp.sum(h * w2_ref[...], axis=-1)          # (TB,)
    out = out + b2_ref[0, 0]                         # scalar bias from SMEM
    o_ref[...] = out[None, :].astype(o_ref.dtype)    # lane-dense (1, TB) store


@functools.partial(jax.jit, static_argnames=("block_b",))
def net_forward(x, w1, b1, w2, b2, *, block_b=512):
    """x: (B, F) f32; w1: (F, Hp); b1: (1, Hp); w2: (1, Hp); b2: (1, 1).

    Parameters must already be padded/reshaped by `pad_params`.
    Returns (B, 1) f32, matching the PyTorch forward.
    """
    B, F = x.shape
    Hp = w1.shape[1]

    # Batch tile: one full tile for small batches, 128-multiple tiles otherwise
    # (keeps the x block sublane-aligned and the output block lane-dense).
    if B <= block_b:
        TB = _round_up(B, 8)
    else:
        assert block_b % 128 == 0, "block_b must be a multiple of 128"
        TB = block_b
    Bp = _round_up(B, TB)
    if Bp != B:
        x = jnp.pad(x, ((0, Bp - B), (0, 0)))
    num_tiles = Bp // TB

    # Note: for very large n_feature, W1 (F x Hp x 4B) should additionally be
    # tiled along F with a pl.when-guarded accumulator to respect v7x's 64 MiB
    # VMEM; not needed at these sizes.
    out = pl.pallas_call(
        mlp_kernel,
        out_shape=jax.ShapeDtypeStruct((1, Bp), jnp.float32),
        grid_spec=pltpu.PrefetchScalarGridSpec(
            num_scalar_prefetch=0,
            grid=(num_tiles,),
            in_specs=[
                pl.BlockSpec((TB, F), lambda i: (i, 0)),   # x: streamed tiles
                pl.BlockSpec((F, Hp), lambda i: (0, 0)),   # W1: resident
                pl.BlockSpec((1, Hp), lambda i: (0, 0)),   # b1: resident
                pl.BlockSpec((1, Hp), lambda i: (0, 0)),   # w2 row: resident
                pl.BlockSpec(memory_space=pltpu.MemorySpace.SMEM),  # b2 scalar
            ],
            out_specs=pl.BlockSpec((1, TB), lambda i: (0, i)),      # lane-dense
        ),
        compiler_params=pltpu.CompilerParams(
            # Independent batch tiles: shard across TensorCores (v7x megacore)
            # and let BlockSpec double-buffer the x-tile DMA under the matmul.
            dimension_semantics=("parallel",),
        ),
    )(x, w1, b1, w2, b2)

    # (1, Bp) lane-dense -> (B, 1): free layout plumbing outside the kernel.
    return out.reshape(Bp, 1)[:B]


def init_params(key, n_feature, hidden=HIDDEN, out=1):
    """Matches the PyTorch module: weights re-initialized with
    torch.nn.init.kaiming_uniform_(mode='fan_in', a=0) -> bound = sqrt(6/fan_in);
    biases keep nn.Linear's default U(-1/sqrt(fan_in), +1/sqrt(fan_in))."""
    k1, k2, k3, k4 = jax.random.split(key, 4)

    def kaiming_uniform(k, fan_in, shape):
        bound = math.sqrt(6.0 / fan_in)      # gain sqrt(2) * sqrt(3/fan_in)
        return jax.random.uniform(k, shape, jnp.float32, -bound, bound)

    def bias_uniform(k, fan_in, shape):
        bound = 1.0 / math.sqrt(fan_in)
        return jax.random.uniform(k, shape, jnp.float32, -bound, bound)

    # Stored as (in_features, out_features) — transpose of torch's (out, in).
    w1 = kaiming_uniform(k1, n_feature, (n_feature, hidden))
    b1 = bias_uniform(k2, n_feature, (1, hidden))
    w2 = kaiming_uniform(k3, hidden, (hidden, out))
    b2 = bias_uniform(k4, hidden, (1, out))
    return w1, b1, w2, b2


def pad_params(w1, b1, w2, b2, hidden_pad=HIDDEN_PAD):
    """Zero-pad the hidden dim 500 -> 512 and reshape w2 into a row vector.
    Exact: padded hidden activations are relu(0)=0 and their w2 rows are 0."""
    _, h = w1.shape
    ph = hidden_pad - h
    w1p = jnp.pad(w1, ((0, 0), (0, ph)))
    b1p = jnp.pad(b1, ((0, 0), (0, ph)))
    w2p = jnp.pad(w2, ((0, ph), (0, 0))).reshape(1, hidden_pad)
    return w1p, b1p, w2p, b2


if __name__ == "__main__":
    key = jax.random.PRNGKey(0)
    kx, kp = jax.random.split(key)

    batch, n_feature = 256, 32
    x = jax.random.normal(kx, (batch, n_feature), jnp.float32)
    w1, b1, w2, b2 = init_params(kp, n_feature)
    w1p, b1p, w2p, b2p = pad_params(w1, b1, w2, b2)

    # block_b=128 gives a 2-step batch grid even at this small demo size, so
    # the tiled / pipelined path (index maps, lane-dense out) is exercised.
    y = net_forward(x, w1p, b1p, w2p, b2p, block_b=128)
    y = jax.block_until_ready(y)

    # Reference in plain JAX on the *unpadded* parameters (same math as torch).
    h_ref = jnp.maximum(x @ w1 + b1, 0.0)
    y_ref = h_ref @ w2 + b2
    assert y.shape == (batch, 1)
    assert jnp.allclose(y, y_ref, atol=1e-4, rtol=1e-4), float(
        jnp.max(jnp.abs(y - y_ref))
    )

    print("KERNEL_OK")
</pallas_src>

<mosaic_0001>
module attributes {stable_mosaic.version = 11 : i64} {
  func.func @mlp_kernel(%arg0: i32, %arg1: memref<128x32xf32, #tpu.memory_space<vmem>>, %arg2: memref<32x512xf32, #tpu.memory_space<vmem>>, %arg3: memref<1x512xf32, #tpu.memory_space<vmem>>, %arg4: memref<1x512xf32, #tpu.memory_space<vmem>>, %arg5: memref<1x1xf32, #tpu.memory_space<smem>>, %arg6: memref<1x128xf32, #tpu.memory_space<vmem>>) attributes {dimension_semantics = [#tpu.dimension_semantics<parallel>], iteration_bounds = array<i64: 2>, scalar_prefetch = 0 : i64, scratch_operands = 0 : i64, tpu.core_type = #tpu.core_type<tc>, window_params = [{transform_indices = @transform_0, window_bounds = array<i64: 128, 32>}, {pipeline_mode = #tpu.pipeline_mode<synchronous>, transform_indices = @transform_1, window_bounds = array<i64: 32, 512>}, {pipeline_mode = #tpu.pipeline_mode<synchronous>, transform_indices = @transform_2, window_bounds = array<i64: 1, 512>}, {pipeline_mode = #tpu.pipeline_mode<synchronous>, transform_indices = @transform_3, window_bounds = array<i64: 1, 512>}, {transform_indices = @transform_4, window_bounds = array<i64: 1, 1>}, {transform_indices = @transform_5, window_bounds = array<i64: 1, 128>}]} {
    %c0 = arith.constant 0 : index
    %c0_0 = arith.constant 0 : index
    %0 = vector.load %arg1[%c0, %c0_0] : memref<128x32xf32, #tpu.memory_space<vmem>>, vector<128x32xf32>
    %c0_1 = arith.constant 0 : index
    %c0_2 = arith.constant 0 : index
    %1 = vector.load %arg2[%c0_1, %c0_2] : memref<32x512xf32, #tpu.memory_space<vmem>>, vector<32x512xf32>
    %cst = arith.constant dense<0.000000e+00> : vector<128x512xf32>
    %2 = tpu.matmul %0, %1, %cst {dimension_numbers = #tpu.dot_dimension_numbers<[1], [0], [0], [1], [0, 0, 1, 1], [], []>} : vector<128x32xf32>, vector<32x512xf32>, vector<128x512xf32> -> vector<128x512xf32>
    %c0_3 = arith.constant 0 : index
    %c0_4 = arith.constant 0 : index
    %3 = vector.load %arg3[%c0_3, %c0_4] : memref<1x512xf32, #tpu.memory_space<vmem>>, vector<1x512xf32>
    %4 = vector.broadcast %3 : vector<1x512xf32> to vector<128x512xf32>
    %5 = arith.addf %2, %4 : vector<128x512xf32>
    %cst_5 = arith.constant 0.000000e+00 : f32
    %6 = vector.broadcast %cst_5 : f32 to vector<128x512xf32>
    %7 = arith.maximumf %5, %6 : vector<128x512xf32>
    %c0_6 = arith.constant 0 : index
    %c0_7 = arith.constant 0 : index
    %8 = vector.load %arg4[%c0_6, %c0_7] : memref<1x512xf32, #tpu.memory_space<vmem>>, vector<1x512xf32>
    %9 = vector.broadcast %8 : vector<1x512xf32> to vector<128x512xf32>
    %10 = arith.mulf %7, %9 : vector<128x512xf32>
    %cst_8 = arith.constant dense<0.000000e+00> : vector<128xf32>
    %11 = vector.multi_reduction <add>, %10, %cst_8 [1] : vector<128x512xf32> to vector<128xf32>
    %c0_9 = arith.constant 0 : index
    %c0_10 = arith.constant 0 : index
    %12 = memref.load %arg5[%c0_9, %c0_10] : memref<1x1xf32, #tpu.memory_space<smem>>
    %13 = vector.broadcast %12 : f32 to vector<128xf32>
    %14 = arith.addf %11, %13 : vector<128xf32>
    %15 = vector.shape_cast %14 : vector<128xf32> to vector<1x128xf32>
    %c0_11 = arith.constant 0 : index
    %c0_12 = arith.constant 0 : index
    %16 = vector.load %arg6[%c0_11, %c0_12] : memref<1x128xf32, #tpu.memory_space<vmem>>, vector<1x128xf32>
    tpu.vector_store %arg6[%c0_11, %c0_12], %15 {strides = array<i32>} : memref<1x128xf32, #tpu.memory_space<vmem>>, vector<1x128xf32>,
    return
  }
  func.func @transform_0(%arg0: i32) -> (i32, i32) {
    %c0_i32 = arith.constant 0 : i32
    %c0_i32_0 = arith.constant 0 : i32
    return %arg0, %c0_i32 : i32, i32
  }
  func.func @transform_1(%arg0: i32) -> (i32, i32) {
    %c0_i32 = arith.constant 0 : i32
    %c0_i32_0 = arith.constant 0 : i32
    %c0_i32_1 = arith.constant 0 : i32
    return %c0_i32, %c0_i32_0 : i32, i32
  }
  func.func @transform_2(%arg0: i32) -> (i32, i32) {
    %c0_i32 = arith.constant 0 : i32
    %c0_i32_0 = arith.constant 0 : i32
    %c0_i32_1 = arith.constant 0 : i32
    return %c0_i32, %c0_i32_0 : i32, i32
  }
  func.func @transform_3(%arg0: i32) -> (i32, i32) {
    %c0_i32 = arith.constant 0 : i32
    %c0_i32_0 = arith.constant 0 : i32
    %c0_i32_1 = arith.constant 0 : i32
    return %c0_i32, %c0_i32_0 : i32, i32
  }
  func.func @transform_4(%arg0: i32) -> (i32, i32) {
    %c0_i32 = arith.constant 0 : i32
    %c0_i32_0 = arith.constant 0 : i32
    %c0_i32_1 = arith.constant 0 : i32
    return %c0_i32, %c0_i32_0 : i32, i32
  }
  func.func @transform_5(%arg0: i32) -> (i32, i32) {
    %c0_i32 = arith.constant 0 : i32
    %c0_i32_0 = arith.constant 0 : i32
    return %c0_i32, %arg0 : i32, i32
  }
}

</mosaic_0001>

<llo_original>
// kernel: net_forward.1
$region0: #{net_forward.1}
  #allocation0 [shape = 'u32[]', space=smem, size = 0x4, offset = 0x4, fixed_abs, tag = 'smem constant byte address 0x4 - core index']
  #allocation1 [shape = 'u32[72,128]{1,0:T(1,128)}', space=vmem, size = 0x9000, scoped, tag = 'internal scratch']
  #allocation2 [shape = 'f32[1,1]{1,0:T(1,128)S(6)}', space=smem, size = 0x200, scoped, tag = 'scoped memory for net_forward.1']
  %s0 = inlined_call_operand.vmem [shape: f32[256,32], index: 0, kind: input, shape index: {}]
  %s1 = inlined_call_operand.vmem [shape: f32[32,512], index: 1, kind: input, shape index: {}]
  %s2 = inlined_call_operand.vmem [shape: f32[1,512], index: 2, kind: input, shape index: {}]
  %s3 = inlined_call_operand.vmem [shape: f32[1,512], index: 3, kind: input, shape index: {}]
  %s4 = inlined_call_operand.<no memory space> [shape: f32[1,1], index: 4, kind: input, shape index: {}]
  %s5 = inlined_call_operand.hbm [shape: f32[1,256], index: 5, kind: output, shape index: {}]
  %s6 = sld [smem:[#allocation0]]
  $region53: #{net_forward.1} parent=0
    _
  %s8 = ssub.s32 1, %s6
  %s9 = scalar_select 0, %s8, %s6
  %10 = sst [smem:[#allocation2]] %s4
  $region1: #{net_forward.1} parent=0
    #allocation3 [shape = 'u8[1024]{0}', space=vmem, size = 0x400, scoped, tag = 'output window, operand 0']
    #allocation4 [shape = 's32[2]{0}', space=sflag, size = 0x8, scoped, tag = 'scoped memory for net_forward.1']
    %11 = vsyncpa [#allocation4], 0
    %s12 = scalar_lea.sflag [#allocation4], 1
    %13 = vsyncpa %s12, 0
    loop: start=0, step=1, limit=4
    $region2: #{net_forward.1} parent=1 // loop_pre_header
      _
    $region3: #{net_forward.1} parent=1 // loop_header
      %s15 = sphi 0, %s19
      %p16 = scmp.ge.s32.totalorder %s15, 4
      %s25 = sphi 0, %s27
      %s28 = sphi 0, %s25
      %s29 = sphi 0, %s28
      %s45 = sphi 0, %s29
      %s49 = sphi 0, %s49
      %s51 = sphi 0, %s49
      %s52 = sphi 0, %s51
      %s66 = sphi 0, %s52
      %s70 = sphi 0, %s70
      %s72 = sphi 0, %s70
      %s73 = sphi 0, %s72
      %s87 = sphi 0, %s73
      %s91 = sphi 0, %s91
      %s93 = sphi 0, %s91
      %s94 = sphi 0, %s93
      %s108 = sphi 0, %s94
      %s112 = sphi 0, %s112
      %s114 = sphi 0, %s112
      %s115 = sphi 0, %s114
      %s129 = sphi 0, %s115
      %s135 = sphi 0, %s137
      %s138 = sphi 0, %s135
      %s139 = sphi 0, %s138
      %s155 = sphi 0, %s139
    $region4: #{net_forward.1} parent=1 // loop_header_branch
      %18 = sbr.rel (%p16) target = $region8
    $region5: #{net_forward.1} parent=1 // loop_body
      %s20 = ssub.s32 %s15, 1
      %s21 = ssub.s32 %s15, 2
      %s22 = sadd.s32 %s15, 1
      %s23 = ssub.s32 %s15, %s22
      %p24 = scmp.eq.s32.totalorder %s23, 0
      %s26 = sadd.s32 %s25, 1
      %s27 = scalar_select %p24, %s25, %s26
      %p30 = pneg %p24
      %p31 = scmp.eq.s32.totalorder %s15, 1
      %p32 = por %p30, %p31
      %p33 = scmp.ne.s32.totalorder %s25, %s28
      %p34 = scmp.eq.s32.totalorder %s15, 0
      %p35 = por %p33, %p34
      %p36 = scmp.ne.s32.totalorder %s25, %s28
      %p37 = scmp.eq.s32.totalorder %s20, 1
      %p38 = por %p36, %p37
      %p39 = scmp.ne.s32.totalorder %s28, %s29
      %p40 = scmp.eq.s32.totalorder %s20, 0
      %p41 = por %p39, %p40
      %p42 = scmp.ne.s32.totalorder %s28, %s29
      %p43 = scmp.eq.s32.totalorder %s21, 1
      %p44 = por %p42, %p43
      %p46 = scmp.ne.s32.totalorder %s29, %s45
      %p47 = scmp.eq.s32.totalorder %s21, 0
      %p48 = por %p46, %p47
      %s50 = sadd.s32 %s49, 1
      %p53 = scmp.eq.s32.totalorder %s15, 1
      %p54 = scmp.ne.s32.totalorder %s49, %s51
      %p55 = scmp.eq.s32.totalorder %s15, 0
      %p56 = por %p54, %p55
      %p57 = scmp.ne.s32.totalorder %s49, %s51
      %p58 = scmp.eq.s32.totalorder %s20, 1
      %p59 = por %p57, %p58
      %p60 = scmp.ne.s32.totalorder %s51, %s52
      %p61 = scmp.eq.s32.totalorder %s20, 0
      %p62 = por %p60, %p61
      %p63 = scmp.ne.s32.totalorder %s51, %s52
      %p64 = scmp.eq.s32.totalorder %s21, 1
      %p65 = por %p63, %p64
      %p67 = scmp.ne.s32.totalorder %s52, %s66
      %p68 = scmp.eq.s32.totalorder %s21, 0
      %p69 = por %p67, %p68
      %s71 = sadd.s32 %s70, 1
      %p74 = scmp.eq.s32.totalorder %s15, 1
      %p75 = scmp.ne.s32.totalorder %s70, %s72
      %p76 = scmp.eq.s32.totalorder %s15, 0
      %p77 = por %p75, %p76
      %p78 = scmp.ne.s32.totalorder %s70, %s72
      %p79 = scmp.eq.s32.totalorder %s20, 1
      %p80 = por %p78, %p79
      %p81 = scmp.ne.s32.totalorder %s72, %s73
      %p82 = scmp.eq.s32.totalorder %s20, 0
      %p83 = por %p81, %p82
      %p84 = scmp.ne.s32.totalorder %s72, %s73
      %p85 = scmp.eq.s32.totalorder %s21, 1
      %p86 = por %p84, %p85
      %p88 = scmp.ne.s32.totalorder %s73, %s87
      %p89 = scmp.eq.s32.totalorder %s21, 0
      %p90 = por %p88, %p89
      %s92 = sadd.s32 %s91, 1
      %p95 = scmp.eq.s32.totalorder %s15, 1
      %p96 = scmp.ne.s32.totalorder %s91, %s93
      %p97 = scmp.eq.s32.totalorder %s15, 0
      %p98 = por %p96, %p97
      %p99 = scmp.ne.s32.totalorder %s91, %s93
      %p100 = scmp.eq.s32.totalorder %s20, 1
      %p101 = por %p99, %p100
      %p102 = scmp.ne.s32.totalorder %s93, %s94
      %p103 = scmp.eq.s32.totalorder %s20, 0
      %p104 = por %p102, %p103
      %p105 = scmp.ne.s32.totalorder %s93, %s94
      %p106 = scmp.eq.s32.totalorder %s21, 1
      %p107 = por %p105, %p106
      %p109 = scmp.ne.s32.totalorder %s94, %s108
      %p110 = scmp.eq.s32.totalorder %s21, 0
      %p111 = por %p109, %p110
      %s113 = sadd.s32 %s112, 1
      %p116 = scmp.eq.s32.totalorder %s15, 1
      %p117 = scmp.ne.s32.totalorder %s112, %s114
      %p118 = scmp.eq.s32.totalorder %s15, 0
      %p119 = por %p117, %p118
      %p120 = scmp.ne.s32.totalorder %s112, %s114
      %p121 = scmp.eq.s32.totalorder %s20, 1
      %p122 = por %p120, %p121
      %p123 = scmp.ne.s32.totalorder %s114, %s115
      %p124 = scmp.eq.s32.totalorder %s20, 0
      %p125 = por %p123, %p124
      %p126 = scmp.ne.s32.totalorder %s114, %s115
      %p127 = scmp.eq.s32.totalorder %s21, 1
      %p128 = por %p126, %p127
      %p130 = scmp.ne.s32.totalorder %s115, %s129
      %p131 = scmp.eq.s32.totalorder %s21, 0
      %p132 = por %p130, %p131
      %s133 = ssub.s32 %s15, %s22
      %p134 = scmp.eq.s32.totalorder %s133, 0
      %s136 = sadd.s32 %s135, 1
      %s137 = scalar_select %p134, %s135, %s136
      %p140 = pneg %p134
      %p141 = scmp.eq.s32.totalorder %s15, 1
      %p142 = por %p140, %p141
      %p143 = scmp.ne.s32.totalorder %s135, %s138
      %p144 = scmp.eq.s32.totalorder %s15, 0
      %p145 = por %p143, %p144
      %p146 = scmp.ne.s32.totalorder %s135, %s138
      %p147 = scmp.eq.s32.totalorder %s20, 1
      %p148 = por %p146, %p147
      %p149 = scmp.ne.s32.totalorder %s138, %s139
      %p150 = scmp.eq.s32.totalorder %s20, 0
      %p151 = por %p149, %p150
      %p152 = scmp.ne.s32.totalorder %s138, %s139
      %p153 = scmp.eq.s32.totalorder %s21, 1
      %p154 = por %p152, %p153
      %p156 = scmp.ne.s32.totalorder %s139, %s155
      %p157 = scmp.eq.s32.totalorder %s21, 0
      %p158 = por %p156, %p157
      %p159 = scmp.le.s32.totalorder 1, %s15
      %p160 = scmp.lt.s32.totalorder %s15, 3
      %p161 = pnand %p159, %p160
      %p162 = pneg %p161
      // Predicated region
      $region9: #{net_forward.1} parent=5 // pred_check
        _
      $region10: #{net_forward.1} parent=5 // pred_check_branch
        %164 = sbr.rel (%p161) target = $region12
      $region11: #{net_forward.1} parent=5 // pred_region
        %s165 = ssub.s32 %s15, 1
        // Predicated region
        $region13: #{net_forward.1} parent=11 // pred_check
          %p166 = pneg %p62
        $region14: #{net_forward.1} parent=11 // pred_check_branch
          %168 = sbr.rel (%p166) target = $region16
        $region15: #{net_forward.1} parent=11 // pred_region
          _
        $region16: #{net_forward.1} parent=11 // pred_fallthru
          _
        // Predicated region
        $region17: #{net_forward.1} parent=11 // pred_check
          %p169 = pneg %p83
        $region18: #{net_forward.1} parent=11 // pred_check_branch
          %171 = sbr.rel (%p169) target = $region20
        $region19: #{net_forward.1} parent=11 // pred_region
          _
        $region20: #{net_forward.1} parent=11 // pred_fallthru
          _
        // Predicated region
        $region21: #{net_forward.1} parent=11 // pred_check
          %p172 = pneg %p104
        $region22: #{net_forward.1} parent=11 // pred_check_branch
          %174 = sbr.rel (%p172) target = $region24
        $region23: #{net_forward.1} parent=11 // pred_region
          _
        $region24: #{net_forward.1} parent=11 // pred_fallthru
          _
        // Predicated region
        $region25: #{net_forward.1} parent=11 // pred_check
          %p175 = pneg %p125
        $region26: #{net_forward.1} parent=11 // pred_check_branch
          %177 = sbr.rel (%p175) target = $region28
        $region27: #{net_forward.1} parent=11 // pred_region
          _
        $region28: #{net_forward.1} parent=11 // pred_fallthru
          _
      $region12: #{net_forward.1} parent=5 // pred_fallthru
        _
      %p178 = scmp.lt.s32.totalorder %s15, 2
      // Predicated region
      $region29: #{net_forward.1} parent=5 // pred_check
        %p179 = pneg %p178
      $region30: #{net_forward.1} parent=5 // pred_check_branch
        %181 = sbr.rel (%p179) target = $region32
      $region31: #{net_forward.1} parent=5 // pred_region
        // Predicated region
        $region33: #{net_forward.1} parent=31 // pred_check
          %p182 = pneg %p35
        $region34: #{net_forward.1} parent=31 // pred_check_branch
          %184 = sbr.rel (%p182) target = $region36
        $region35: #{net_forward.1} parent=31 // pred_region
          %s185 = smul.u32 16, %s15
          %p186 = scmp.lt.s32.totalorder %s185, 31
          %s187 = scalar_select %p186, %s185, 31
          %s188 = smul.addr %s187, 8
          %s189 = scalar_lea.vmem %s0, %s188
          %s190 = smul.u32 16, %s15
        $region36: #{net_forward.1} parent=31 // pred_fallthru
          _
      $region32: #{net_forward.1} parent=5 // pred_fallthru
        _
      %p191 = scmp.le.s32.totalorder 1, %s15
      %p192 = scmp.lt.s32.totalorder %s15, 3
      %p193 = pnand %p191, %p192
      %p194 = pneg %p193
      // Predicated region
      $region37: #{net_forward.1} parent=5 // pred_check
        _
      $region38: #{net_forward.1} parent=5 // pred_check_branch
        %196 = sbr.rel (%p193) target = $region40
      $region39: #{net_forward.1} parent=5 // pred_region
        %s197 = ssub.s32 %s15, 1
        %s198 = smul.u32 16, %s20
        %p199 = scmp.lt.s32.totalorder %s198, 31
        %s200 = scalar_select %p199, %s198, 31
        %s201 = smul.addr %s200, 8
        %s202 = scalar_lea.vmem %s0, %s201
        %p203 = pneg %p41
        %p204 = pneg %p38
        %p205 = pneg %p62
        %p206 = pneg %p59
        %p207 = pneg %p83
        %p208 = pneg %p80
        %p209 = pneg %p104
        %p210 = pneg %p101
        %p211 = pneg %p125
        %p212 = pneg %p122
        %p213 = pneg %p151
        %p214 = pneg %p148
        %s215 = sand.u32 %s138, 1
        %s216 = scalar_lea.sflag [#allocation4], %s215
        %s217 = sand.u32 %s138, 1
        %s218 = scalar_lea.vmem [#allocation3], %s217
        %s219 = smul.u32 16, %s20
        %p220 = scmp.lt.s32.totalorder %s219, 31
        %s221 = scalar_select %p220, %s219, 31
        %s222 = smul.addr %s221, 8
        %s223 = scalar_lea.vmem %s0, %s222
        %s224 = smul.u32 16, %s20
        %v225 = vld [vmem:[%s223] sm:$0xff]
        %v226 = vld [vmem:[%s223 + $0x8] sm:$0xff]
        %v227 = vld [vmem:[%s223 + $0x10] sm:$0xff]
        %v228 = vld [vmem:[%s223 + $0x18] sm:$0xff]
        %v229 = vld [vmem:[%s223 + $0x20] sm:$0xff]
        %v230 = vld [vmem:[%s223 + $0x28] sm:$0xff]
        %v231 = vld [vmem:[%s223 + $0x30] sm:$0xff]
        %v232 = vld [vmem:[%s223 + $0x38] sm:$0xff]
        %v233 = vld [vmem:[%s223 + $0x40] sm:$0xff]
        %v234 = vld [vmem:[%s223 + $0x48] sm:$0xff]
        %v235 = vld [vmem:[%s223 + $0x50] sm:$0xff]
        %v236 = vld [vmem:[%s223 + $0x58] sm:$0xff]
        %v237 = vld [vmem:[%s223 + $0x60] sm:$0xff]
        %v238 = vld [vmem:[%s223 + $0x68] sm:$0xff]
        %v239 = vld [vmem:[%s223 + $0x70] sm:$0xff]
        %v240 = vld [vmem:[%s223 + $0x78] sm:$0xff]
        %v241 = vld [vmem:[%s1] sm:$0xff]
        %v242 = vld [vmem:[%s1 + $0x8] sm:$0xff]
        %v243 = vld [vmem:[%s1 + $0x10] sm:$0xff]
        %v244 = vld [vmem:[%s1 + $0x18] sm:$0xff]
        %v245 = vld [vmem:[%s1 + $0x20] sm:$0xff]
        %v246 = vld [vmem:[%s1 + $0x28] sm:$0xff]
        %v247 = vld [vmem:[%s1 + $0x30] sm:$0xff]
        %v248 = vld [vmem:[%s1 + $0x38] sm:$0xff]
        %v249 = vld [vmem:[%s1 + $0x40] sm:$0xff]
        %v250 = vld [vmem:[%s1 + $0x48] sm:$0xff]
        %v251 = vld [vmem:[%s1 + $0x50] sm:$0xff]
        %v252 = vld [vmem:[%s1 + $0x58] sm:$0xff]
        %v253 = vld [vmem:[%s1 + $0x60] sm:$0xff]
        %v254 = vld [vmem:[%s1 + $0x68] sm:$0xff]
        %v255 = vld [vmem:[%s1 + $0x70] sm:$0xff]
        %v256 = vld [vmem:[%s1 + $0x78] sm:$0xff]
        %v257 = vld [vmem:[%s2] sm:$0xf]
        %v259 = vperm.slane %v257, 0
        %v260 = vperm.slane %v257, 1
        %v261 = vperm.slane %v257, 2
        %v262 = vperm.slane %v257, 3
        %vm267 = vcmask 261120
        %v269 = vsel %vm267, %v225, 0
        %v272 = vsel %vm267, %v226, 0
        %v275 = vsel %vm267, %v227, 0
        %v278 = vsel %vm267, %v228, 0
        %v281 = vsel %vm267, %v229, 0
        %v284 = vsel %vm267, %v230, 0
        %v287 = vsel %vm267, %v231, 0
        %v290 = vsel %vm267, %v232, 0
        %v293 = vsel %vm267, %v233, 0
        %v296 = vsel %vm267, %v234, 0
        %v299 = vsel %vm267, %v235, 0
        %v302 = vsel %vm267, %v236, 0
        %v305 = vsel %vm267, %v237, 0
        %v308 = vsel %vm267, %v238, 0
        %v311 = vsel %vm267, %v239, 0
        %v314 = vsel %vm267, %v240, 0
        %316 = vmatpush.msra.mxu0 0.0
        %317 = vmatpush.msra.mxu0 0.0
        %318 = vmatpush.msra.mxu0 0.0
        %319 = vmatpush.msra.mxu0 0.0
        %320 = vmatpush.msra.mxu0 0.0
        %321 = vmatpush.msra.mxu0 0.0
        %322 = vmatpush.msra.mxu0 0.0
        %323 = vmatpush.msra.mxu0 0.0
        %324 = vmatpush.msra.mxu0 0.0
        %325 = vmatpush.msra.mxu0 0.0
        %326 = vmatpush.msra.mxu0 0.0
        %327 = vmatpush.msra.mxu0 0.0
        %328 = vmatpush.msra.mxu0 %v253
        %329 = vmatpush.msra.mxu0 %v249
        %330 = vmatpush.msra.mxu0 %v245
        %331 = vmatpush.msra.mxu0 %v241
        %332 = vmatmul.f32.gmra.mxu0 %v269
        %v333 = vpop.f32.mrf.mxu0
        %v334 = vadd.f32 %v259, %v333
        %335 = vmatmul.f32.gmra.mxu0 %v272
        %v336 = vpop.f32.mrf.mxu0
        %v337 = vadd.f32 %v259, %v336
        %338 = vmatmul.f32.gmra.mxu0 %v275
        %v339 = vpop.f32.mrf.mxu0
        %v340 = vadd.f32 %v259, %v339
        %341 = vmatmul.f32.gmra.mxu0 %v278
        %v342 = vpop.f32.mrf.mxu0
        %v343 = vadd.f32 %v259, %v342
        %344 = vmatmul.f32.gmra.mxu0 %v281
        %v345 = vpop.f32.mrf.mxu0
        %v346 = vadd.f32 %v259, %v345
        %347 = vmatmul.f32.gmra.mxu0 %v284
        %v348 = vpop.f32.mrf.mxu0
        %v349 = vadd.f32 %v259, %v348
        %350 = vmatmul.f32.gmra.mxu0 %v287
        %v351 = vpop.f32.mrf.mxu0
        %v352 = vadd.f32 %v259, %v351
        %353 = vmatmul.f32.gmra.mxu0 %v290
        %v354 = vpop.f32.mrf.mxu0
        %v355 = vadd.f32 %v259, %v354
        %356 = vmatmul.f32.gmra.mxu0 %v293
        %v357 = vpop.f32.mrf.mxu0
        %v358 = vadd.f32 %v259, %v357
        %359 = vmatmul.f32.gmra.mxu0 %v296
        %v360 = vpop.f32.mrf.mxu0
        %v361 = vadd.f32 %v259, %v360
        %362 = vmatmul.f32.gmra.mxu0 %v299
        %v363 = vpop.f32.mrf.mxu0
        %v364 = vadd.f32 %v259, %v363
        %365 = vmatmul.f32.gmra.mxu0 %v302
        %v366 = vpop.f32.mrf.mxu0
        %v367 = vadd.f32 %v259, %v366
        %368 = vmatmul.f32.gmra.mxu0 %v305
        %v369 = vpop.f32.mrf.mxu0
        %v370 = vadd.f32 %v259, %v369
        %371 = vmatmul.f32.gmra.mxu0 %v308
        %v372 = vpop.f32.mrf.mxu0
        %v373 = vadd.f32 %v259, %v372
        %374 = vmatmul.f32.gmra.mxu0 %v311
        %v375 = vpop.f32.mrf.mxu0
        %v376 = vadd.f32 %v259, %v375
        %377 = vmatmul.f32.gmra.mxu0 %v314
        %v378 = vpop.f32.mrf.mxu0
        %v379 = vadd.f32 %v259, %v378
        %380 = vdwg.mxu0
        %381 = vmatpush.msra.mxu0 0.0
        %382 = vmatpush.msra.mxu0 0.0
        %383 = vmatpush.msra.mxu0 0.0
        %384 = vmatpush.msra.mxu0 0.0
        %385 = vmatpush.msra.mxu0 0.0
        %386 = vmatpush.msra.mxu0 0.0
        %387 = vmatpush.msra.mxu0 0.0
        %388 = vmatpush.msra.mxu0 0.0
        %389 = vmatpush.msra.mxu0 0.0
        %390 = vmatpush.msra.mxu0 0.0
        %391 = vmatpush.msra.mxu0 0.0
        %392 = vmatpush.msra.mxu0 0.0
        %393 = vmatpush.msra.mxu0 %v254
        %394 = vmatpush.msra.mxu0 %v250
        %395 = vmatpush.msra.mxu0 %v246
        %396 = vmatpush.msra.mxu0 %v242
        %397 = vmatmul.f32.gmra.mxu0 %v269
        %v398 = vpop.f32.mrf.mxu0
        %v399 = vadd.f32 %v260, %v398
        %400 = vmatmul.f32.gmra.mxu0 %v272
        %v401 = vpop.f32.mrf.mxu0
        %v402 = vadd.f32 %v260, %v401
        %403 = vmatmul.f32.gmra.mxu0 %v275
        %v404 = vpop.f32.mrf.mxu0
        %v405 = vadd.f32 %v260, %v404
        %406 = vmatmul.f32.gmra.mxu0 %v278
        %v407 = vpop.f32.mrf.mxu0
        %v408 = vadd.f32 %v260, %v407
        %409 = vmatmul.f32.gmra.mxu0 %v281
        %v410 = vpop.f32.mrf.mxu0
        %v411 = vadd.f32 %v260, %v410
        %412 = vmatmul.f32.gmra.mxu0 %v284
        %v413 = vpop.f32.mrf.mxu0
        %v414 = vadd.f32 %v260, %v413
        %415 = vmatmul.f32.gmra.mxu0 %v287
        %v416 = vpop.f32.mrf.mxu0
        %v417 = vadd.f32 %v260, %v416
        %418 = vmatmul.f32.gmra.mxu0 %v290
        %v419 = vpop.f32.mrf.mxu0
        %v420 = vadd.f32 %v260, %v419
        %421 = vmatmul.f32.gmra.mxu0 %v293
        %v422 = vpop.f32.mrf.mxu0
        %v423 = vadd.f32 %v260, %v422
        %424 = vmatmul.f32.gmra.mxu0 %v296
        %v425 = vpop.f32.mrf.mxu0
        %v426 = vadd.f32 %v260, %v425
        %427 = vmatmul.f32.gmra.mxu0 %v299
        %v428 = vpop.f32.mrf.mxu0
        %v429 = vadd.f32 %v260, %v428
        %430 = vmatmul.f32.gmra.mxu0 %v302
        %v431 = vpop.f32.mrf.mxu0
        %v432 = vadd.f32 %v260, %v431
        %433 = vmatmul.f32.gmra.mxu0 %v305
        %v434 = vpop.f32.mrf.mxu0
        %v435 = vadd.f32 %v260, %v434
        %436 = vmatmul.f32.gmra.mxu0 %v308
        %v437 = vpop.f32.mrf.mxu0
        %v438 = vadd.f32 %v260, %v437
        %439 = vmatmul.f32.gmra.mxu0 %v311
        %v440 = vpop.f32.mrf.mxu0
        %v441 = vadd.f32 %v260, %v440
        %442 = vmatmul.f32.gmra.mxu0 %v314
        %v443 = vpop.f32.mrf.mxu0
        %v444 = vadd.f32 %v260, %v443
        %445 = vdwg.mxu0
        %446 = vmatpush.msra.mxu0 0.0
        %447 = vmatpush.msra.mxu0 0.0
        %448 = vmatpush.msra.mxu0 0.0
        %449 = vmatpush.msra.mxu0 0.0
        %450 = vmatpush.msra.mxu0 0.0
        %451 = vmatpush.msra.mxu0 0.0
        %452 = vmatpush.msra.mxu0 0.0
        %453 = vmatpush.msra.mxu0 0.0
        %454 = vmatpush.msra.mxu0 0.0
        %455 = vmatpush.msra.mxu0 0.0
        %456 = vmatpush.msra.mxu0 0.0
        %457 = vmatpush.msra.mxu0 0.0
        %458 = vmatpush.msra.mxu0 %v255
        %459 = vmatpush.msra.mxu0 %v251
        %460 = vmatpush.msra.mxu0 %v247
        %461 = vmatpush.msra.mxu0 %v243
        %462 = vmatmul.f32.gmra.mxu0 %v269
        %v463 = vpop.f32.mrf.mxu0
        %v464 = vadd.f32 %v261, %v463
        %465 = vmatmul.f32.gmra.mxu0 %v272
        %v466 = vpop.f32.mrf.mxu0
        %v467 = vadd.f32 %v261, %v466
        %468 = vmatmul.f32.gmra.mxu0 %v275
        %v469 = vpop.f32.mrf.mxu0
        %v470 = vadd.f32 %v261, %v469
        %471 = vmatmul.f32.gmra.mxu0 %v278
        %v472 = vpop.f32.mrf.mxu0
        %v473 = vadd.f32 %v261, %v472
        %474 = vmatmul.f32.gmra.mxu0 %v281
        %v475 = vpop.f32.mrf.mxu0
        %v476 = vadd.f32 %v261, %v475
        %477 = vmatmul.f32.gmra.mxu0 %v284
        %v478 = vpop.f32.mrf.mxu0
        %v479 = vadd.f32 %v261, %v478
        %480 = vmatmul.f32.gmra.mxu0 %v287
        %v481 = vpop.f32.mrf.mxu0
        %v482 = vadd.f32 %v261, %v481
        %483 = vmatmul.f32.gmra.mxu0 %v290
        %v484 = vpop.f32.mrf.mxu0
        %v485 = vadd.f32 %v261, %v484
        %486 = vmatmul.f32.gmra.mxu0 %v293
        %v487 = vpop.f32.mrf.mxu0
        %v488 = vadd.f32 %v261, %v487
        %489 = vmatmul.f32.gmra.mxu0 %v296
        %v490 = vpop.f32.mrf.mxu0
        %v491 = vadd.f32 %v261, %v490
        %492 = vmatmul.f32.gmra.mxu0 %v299
        %v493 = vpop.f32.mrf.mxu0
        %v494 = vadd.f32 %v261, %v493
        %495 = vmatmul.f32.gmra.mxu0 %v302
        %v496 = vpop.f32.mrf.mxu0
        %v497 = vadd.f32 %v261, %v496
        %498 = vmatmul.f32.gmra.mxu0 %v305
        %v499 = vpop.f32.mrf.mxu0
        %v500 = vadd.f32 %v261, %v499
        %501 = vmatmul.f32.gmra.mxu0 %v308
        %v502 = vpop.f32.mrf.mxu0
        %v503 = vadd.f32 %v261, %v502
        %504 = vmatmul.f32.gmra.mxu0 %v311
        %v505 = vpop.f32.mrf.mxu0
        %v506 = vadd.f32 %v261, %v505
        %507 = vmatmul.f32.gmra.mxu0 %v314
        %v508 = vpop.f32.mrf.mxu0
        %v509 = vadd.f32 %v261, %v508
        %510 = vdwg.mxu0
        %511 = vmatpush.msra.mxu0 0.0
        %512 = vmatpush.msra.mxu0 0.0
        %513 = vmatpush.msra.mxu0 0.0
        %514 = vmatpush.msra.mxu0 0.0
        %515 = vmatpush.msra.mxu0 0.0
        %516 = vmatpush.msra.mxu0 0.0
        %517 = vmatpush.msra.mxu0 0.0
        %518 = vmatpush.msra.mxu0 0.0
        %519 = vmatpush.msra.mxu0 0.0
        %520 = vmatpush.msra.mxu0 0.0
        %521 = vmatpush.msra.mxu0 0.0
        %522 = vmatpush.msra.mxu0 0.0
        %523 = vmatpush.msra.mxu0 %v256
        %524 = vmatpush.msra.mxu0 %v252
        %525 = vmatpush.msra.mxu0 %v248
        %526 = vmatpush.msra.mxu0 %v244
        %527 = vmatmul.f32.gmra.mxu0 %v269
        %v528 = vpop.f32.mrf.mxu0
        %v529 = vadd.f32 %v262, %v528
        %530 = vmatmul.f32.gmra.mxu0 %v272
        %v531 = vpop.f32.mrf.mxu0
        %v532 = vadd.f32 %v262, %v531
        %533 = vmatmul.f32.gmra.mxu0 %v275
        %v534 = vpop.f32.mrf.mxu0
        %v535 = vadd.f32 %v262, %v534
        %536 = vmatmul.f32.gmra.mxu0 %v278
        %v537 = vpop.f32.mrf.mxu0
        %v538 = vadd.f32 %v262, %v537
        %539 = vmatmul.f32.gmra.mxu0 %v281
        %v540 = vpop.f32.mrf.mxu0
        %v541 = vadd.f32 %v262, %v540
        %542 = vmatmul.f32.gmra.mxu0 %v284
        %v543 = vpop.f32.mrf.mxu0
        %v544 = vadd.f32 %v262, %v543
        %545 = vmatmul.f32.gmra.mxu0 %v287
        %v546 = vpop.f32.mrf.mxu0
        %v547 = vadd.f32 %v262, %v546
        %548 = vmatmul.f32.gmra.mxu0 %v290
        %v549 = vpop.f32.mrf.mxu0
        %v550 = vadd.f32 %v262, %v549
        %551 = vmatmul.f32.gmra.mxu0 %v293
        %v552 = vpop.f32.mrf.mxu0
        %v553 = vadd.f32 %v262, %v552
        %554 = vmatmul.f32.gmra.mxu0 %v296
        %v555 = vpop.f32.mrf.mxu0
        %v556 = vadd.f32 %v262, %v555
        %557 = vmatmul.f32.gmra.mxu0 %v299
        %v558 = vpop.f32.mrf.mxu0
        %v559 = vadd.f32 %v262, %v558
        %560 = vmatmul.f32.gmra.mxu0 %v302
        %v561 = vpop.f32.mrf.mxu0
        %v562 = vadd.f32 %v262, %v561
        %563 = vmatmul.f32.gmra.mxu0 %v305
        %v564 = vpop.f32.mrf.mxu0
        %v565 = vadd.f32 %v262, %v564
        %566 = vmatmul.f32.gmra.mxu0 %v308
        %v567 = vpop.f32.mrf.mxu0
        %v568 = vadd.f32 %v262, %v567
        %569 = vmatmul.f32.gmra.mxu0 %v311
        %v570 = vpop.f32.mrf.mxu0
        %v571 = vadd.f32 %v262, %v570
        %572 = vmatmul.f32.gmra.mxu0 %v314
        %v573 = vpop.f32.mrf.mxu0
        %v574 = vadd.f32 %v262, %v573
        %575 = vdwg.mxu0
        %v576 = vmax.f32 %v334, 0.0
        %v577 = vmax.f32 %v399, 0.0
        %v578 = vmax.f32 %v464, 0.0
        %v579 = vmax.f32 %v529, 0.0
        %v580 = vmax.f32 %v337, 0.0
        %v581 = vmax.f32 %v402, 0.0
        %v582 = vmax.f32 %v467, 0.0
        %v583 = vmax.f32 %v532, 0.0
        %v584 = vmax.f32 %v340, 0.0
        %v585 = vmax.f32 %v405, 0.0
        %v586 = vmax.f32 %v470, 0.0
        %v587 = vmax.f32 %v535, 0.0
        %v588 = vmax.f32 %v343, 0.0
        %v589 = vmax.f32 %v408, 0.0
        %v590 = vmax.f32 %v473, 0.0
        %v591 = vmax.f32 %v538, 0.0
        %v592 = vmax.f32 %v346, 0.0
        %v593 = vmax.f32 %v411, 0.0
        %v594 = vmax.f32 %v476, 0.0
        %v595 = vmax.f32 %v541, 0.0
        %v596 = vmax.f32 %v349, 0.0
        %v597 = vmax.f32 %v414, 0.0
        %v598 = vmax.f32 %v479, 0.0
        %v599 = vmax.f32 %v544, 0.0
        %v600 = vmax.f32 %v352, 0.0
        %v601 = vmax.f32 %v417, 0.0
        %v602 = vmax.f32 %v482, 0.0
        %v603 = vmax.f32 %v547, 0.0
        %v604 = vmax.f32 %v355, 0.0
        %v605 = vmax.f32 %v420, 0.0
        %v606 = vmax.f32 %v485, 0.0
        %v607 = vmax.f32 %v550, 0.0
        %v608 = vmax.f32 %v358, 0.0
        %v609 = vmax.f32 %v423, 0.0
        %v610 = vmax.f32 %v488, 0.0
        %v611 = vmax.f32 %v553, 0.0
        %v612 = vmax.f32 %v361, 0.0
        %v613 = vmax.f32 %v426, 0.0
        %v614 = vmax.f32 %v491, 0.0
        %v615 = vmax.f32 %v556, 0.0
        %v616 = vmax.f32 %v364, 0.0
        %v617 = vmax.f32 %v429, 0.0
        %v618 = vmax.f32 %v494, 0.0
        %v619 = vmax.f32 %v559, 0.0
        %v620 = vmax.f32 %v367, 0.0
        %v621 = vmax.f32 %v432, 0.0
        %v622 = vmax.f32 %v497, 0.0
        %v623 = vmax.f32 %v562, 0.0
        %v624 = vmax.f32 %v370, 0.0
        %v625 = vmax.f32 %v435, 0.0
        %v626 = vmax.f32 %v500, 0.0
        %v627 = vmax.f32 %v565, 0.0
        %v628 = vmax.f32 %v373, 0.0
        %v629 = vmax.f32 %v438, 0.0
        %v630 = vmax.f32 %v503, 0.0
        %v631 = vmax.f32 %v568, 0.0
        %v632 = vmax.f32 %v376, 0.0
        %v633 = vmax.f32 %v441, 0.0
        %v634 = vmax.f32 %v506, 0.0
        %v635 = vmax.f32 %v571, 0.0
        %v636 = vmax.f32 %v379, 0.0
        %v637 = vmax.f32 %v444, 0.0
        %v638 = vmax.f32 %v509, 0.0
        %v639 = vmax.f32 %v574, 0.0
        %v640 = vld [vmem:[%s3] sm:$0xf]
        %v642 = vperm.slane %v640, 0
        %v643 = vperm.slane %v640, 1
        %v644 = vperm.slane %v640, 2
        %v645 = vperm.slane %v640, 3
        %v650 = vmul.f32 %v576, %v642
        %v651 = vmul.f32 %v577, %v643
        %v652 = vmul.f32 %v578, %v644
        %v653 = vmul.f32 %v579, %v645
        %v654 = vmul.f32 %v580, %v642
        %v655 = vmul.f32 %v581, %v643
        %v656 = vmul.f32 %v582, %v644
        %v657 = vmul.f32 %v583, %v645
        %v658 = vmul.f32 %v584, %v642
        %v659 = vmul.f32 %v585, %v643
        %v660 = vmul.f32 %v586, %v644
        %v661 = vmul.f32 %v587, %v645
        %v662 = vmul.f32 %v588, %v642
        %v663 = vmul.f32 %v589, %v643
        %v664 = vmul.f32 %v590, %v644
        %v665 = vmul.f32 %v591, %v645
        %v666 = vmul.f32 %v592, %v642
        %v667 = vmul.f32 %v593, %v643
        %v668 = vmul.f32 %v594, %v644
        %v669 = vmul.f32 %v595, %v645
        %v670 = vmul.f32 %v596, %v642
        %v671 = vmul.f32 %v597, %v643
        %v672 = vmul.f32 %v598, %v644
        %v673 = vmul.f32 %v599, %v645
        %v674 = vmul.f32 %v600, %v642
        %v675 = vmul.f32 %v601, %v643
        %v676 = vmul.f32 %v602, %v644
        %v677 = vmul.f32 %v603, %v645
        %v678 = vmul.f32 %v604, %v642
        %v679 = vmul.f32 %v605, %v643
        %v680 = vmul.f32 %v606, %v644
        %v681 = vmul.f32 %v607, %v645
        %v682 = vmul.f32 %v608, %v642
        %v683 = vmul.f32 %v609, %v643
        %v684 = vmul.f32 %v610, %v644
        %v685 = vmul.f32 %v611, %v645
        %v686 = vmul.f32 %v612, %v642
        %v687 = vmul.f32 %v613, %v643
        %v688 = vmul.f32 %v614, %v644
        %v689 = vmul.f32 %v615, %v645
        %v690 = vmul.f32 %v616, %v642
        %v691 = vmul.f32 %v617, %v643
        %v692 = vmul.f32 %v618, %v644
        %v693 = vmul.f32 %v619, %v645
        %v694 = vmul.f32 %v620, %v642
        %v695 = vmul.f32 %v621, %v643
        %v696 = vmul.f32 %v622, %v644
        %v697 = vmul.f32 %v623, %v645
        %v698 = vmul.f32 %v624, %v642
        %v699 = vmul.f32 %v625, %v643
        %v700 = vmul.f32 %v626, %v644
        %v701 = vmul.f32 %v627, %v645
        %v702 = vmul.f32 %v628, %v642
        %v703 = vmul.f32 %v629, %v643
        %v704 = vmul.f32 %v630, %v644
        %v705 = vmul.f32 %v631, %v645
        %v706 = vmul.f32 %v632, %v642
        %v707 = vmul.f32 %v633, %v643
        %v708 = vmul.f32 %v634, %v644
        %v709 = vmul.f32 %v635, %v645
        %v710 = vmul.f32 %v636, %v642
        %v711 = vmul.f32 %v637, %v643
        %v712 = vmul.f32 %v638, %v644
        %v713 = vmul.f32 %v639, %v645
        %v714 = vadd.f32 %v650, %v651
        %v715 = vadd.f32 %v714, %v652
        %v716 = vadd.f32 %v715, %v653
        %717 = vadd.xlane.f32.xlu0 %v716
        %v718 = vpop.xlane.xlu0 %717
        %v719 = vadd.f32 %v654, %v655
        %v720 = vadd.f32 %v719, %v656
        %v721 = vadd.f32 %v720, %v657
        %722 = vadd.xlane.f32.xlu0 %v721
        %v723 = vpop.xlane.xlu0 %722
        %v724 = vadd.f32 %v658, %v659
        %v725 = vadd.f32 %v724, %v660
        %v726 = vadd.f32 %v725, %v661
        %727 = vadd.xlane.f32.xlu0 %v726
        %v728 = vpop.xlane.xlu0 %727
        %v729 = vadd.f32 %v662, %v663
        %v730 = vadd.f32 %v729, %v664
        %v731 = vadd.f32 %v730, %v665
        %732 = vadd.xlane.f32.xlu0 %v731
        %v733 = vpop.xlane.xlu0 %732
        %v734 = vadd.f32 %v666, %v667
        %v735 = vadd.f32 %v734, %v668
        %v736 = vadd.f32 %v735, %v669
        %737 = vadd.xlane.f32.xlu0 %v736
        %v738 = vpop.xlane.xlu0 %737
        %v739 = vadd.f32 %v670, %v671
        %v740 = vadd.f32 %v739, %v672
        %v741 = vadd.f32 %v740, %v673
        %742 = vadd.xlane.f32.xlu0 %v741
        %v743 = vpop.xlane.xlu0 %742
        %v744 = vadd.f32 %v674, %v675
        %v745 = vadd.f32 %v744, %v676
        %v746 = vadd.f32 %v745, %v677
        %747 = vadd.xlane.f32.xlu0 %v746
        %v748 = vpop.xlane.xlu0 %747
        %v749 = vadd.f32 %v678, %v679
        %v750 = vadd.f32 %v749, %v680
        %v751 = vadd.f32 %v750, %v681
        %752 = vadd.xlane.f32.xlu0 %v751
        %v753 = vpop.xlane.xlu0 %752
        %v754 = vadd.f32 %v682, %v683
        %v755 = vadd.f32 %v754, %v684
        %v756 = vadd.f32 %v755, %v685
        %757 = vadd.xlane.f32.xlu0 %v756
        %v758 = vpop.xlane.xlu0 %757
        %v759 = vadd.f32 %v686, %v687
        %v760 = vadd.f32 %v759, %v688
        %v761 = vadd.f32 %v760, %v689
        %762 = vadd.xlane.f32.xlu0 %v761
        %v763 = vpop.xlane.xlu0 %762
        %v764 = vadd.f32 %v690, %v691
        %v765 = vadd.f32 %v764, %v692
        %v766 = vadd.f32 %v765, %v693
        %767 = vadd.xlane.f32.xlu0 %v766
        %v768 = vpop.xlane.xlu0 %767
        %v769 = vadd.f32 %v694, %v695
        %v770 = vadd.f32 %v769, %v696
        %v771 = vadd.f32 %v770, %v697
        %772 = vadd.xlane.f32.xlu0 %v771
        %v773 = vpop.xlane.xlu0 %772
        %v774 = vadd.f32 %v698, %v699
        %v775 = vadd.f32 %v774, %v700
        %v776 = vadd.f32 %v775, %v701
        %777 = vadd.xlane.f32.xlu0 %v776
        %v778 = vpop.xlane.xlu0 %777
        %v779 = vadd.f32 %v702, %v703
        %v780 = vadd.f32 %v779, %v704
        %v781 = vadd.f32 %v780, %v705
        %782 = vadd.xlane.f32.xlu0 %v781
        %v783 = vpop.xlane.xlu0 %782
        %v784 = vadd.f32 %v706, %v707
        %v785 = vadd.f32 %v784, %v708
        %v786 = vadd.f32 %v785, %v709
        %787 = vadd.xlane.f32.xlu0 %v786
        %v788 = vpop.xlane.xlu0 %787
        %v789 = vadd.f32 %v710, %v711
        %v790 = vadd.f32 %v789, %v712
        %v791 = vadd.f32 %v790, %v713
        %792 = vadd.xlane.f32.xlu0 %v791
        %v793 = vpop.xlane.xlu0 %792
        %s794 = sld [smem:[#allocation2]]
        %v795 = vstv %s794
        %v796 = vadd.f32 %v718, %v795
        %v797 = vadd.f32 %v723, %v795
        %v798 = vadd.f32 %v728, %v795
        %v799 = vadd.f32 %v733, %v795
        %v800 = vadd.f32 %v738, %v795
        %v801 = vadd.f32 %v743, %v795
        %v802 = vadd.f32 %v748, %v795
        %v803 = vadd.f32 %v753, %v795
        %v804 = vadd.f32 %v758, %v795
        %v805 = vadd.f32 %v763, %v795
        %v806 = vadd.f32 %v768, %v795
        %v807 = vadd.f32 %v773, %v795
        %v808 = vadd.f32 %v778, %v795
        %v809 = vadd.f32 %v783, %v795
        %v810 = vadd.f32 %v788, %v795
        %v811 = vadd.f32 %v793, %v795
        %v828 = vlaneseq
        %v829 = vand.u32 %v828, 127
        %v830 = vperm.slane %v796, %v829
        %v831 = vadd.s32 %v829, 4294967288
        %v832 = vperm.slane %v797, %v831
        %vm833 = vcmask 130112
        %v834 = vsel %vm833, %v832, %v830
        %v835 = vadd.s32 %v829, 4294967280
        %v836 = vperm.slane %v798, %v835
        %vm837 = vcmask 195712
        %v838 = vsel %vm837, %v836, %v834
        %v839 = vadd.s32 %v829, 4294967272
        %v840 = vperm.slane %v799, %v839
        %vm841 = vcmask 261312
        %v842 = vsel %vm841, %v840, %v838
        %v843 = vadd.s32 %v829, 4294967264
        %v844 = vperm.slane %v800, %v843
        %vm845 = vcmask 326912
        %v846 = vsel %vm845, %v844, %v842
        %v847 = vadd.s32 %v829, 4294967256
        %v848 = vperm.slane %v801, %v847
        %vm849 = vcmask 392512
        %v850 = vsel %vm849, %v848, %v846
        %v851 = vadd.s32 %v829, 4294967248
        %v852 = vperm.slane %v802, %v851
        %vm853 = vcmask 458112
        %v854 = vsel %vm853, %v852, %v850
        %v855 = vadd.s32 %v829, 4294967240
        %v856 = vperm.slane %v803, %v855
        %vm857 = vcmask 523712
        %v858 = vsel %vm857, %v856, %v854
        %v859 = vadd.s32 %v829, 4294967232
        %v860 = vperm.slane %v804, %v859
        %vm861 = vcmask 589312
        %v862 = vsel %vm861, %v860, %v858
        %v863 = vadd.s32 %v829, 4294967224
        %v864 = vperm.slane %v805, %v863
        %vm865 = vcmask 654912
        %v866 = vsel %vm865, %v864, %v862
        %v867 = vadd.s32 %v829, 4294967216
        %v868 = vperm.slane %v806, %v867
        %vm869 = vcmask 720512
        %v870 = vsel %vm869, %v868, %v866
        %v871 = vadd.s32 %v829, 4294967208
        %v872 = vperm.slane %v807, %v871
        %vm873 = vcmask 786112
        %v874 = vsel %vm873, %v872, %v870
        %v875 = vadd.s32 %v829, 4294967200
        %v876 = vperm.slane %v808, %v875
        %vm877 = vcmask 851712
        %v878 = vsel %vm877, %v876, %v874
        %v879 = vadd.s32 %v829, 4294967192
        %v880 = vperm.slane %v809, %v879
        %vm881 = vcmask 917312
        %v882 = vsel %vm881, %v880, %v878
        %v883 = vadd.s32 %v829, 4294967184
        %v884 = vperm.slane %v810, %v883
        %vm885 = vcmask 982912
        %v886 = vsel %vm885, %v884, %v882
        %v887 = vadd.s32 %v829, 4294967176
        %v888 = vperm.slane %v811, %v887
        %vm889 = vcmask 1048512
        %v890 = vsel %vm889, %v888, %v886
        %892 = vst [vmem:[%s218] sm:$0x1] %v890
        %s893 = sand.u32 %s138, 1
        %s894 = scalar_lea.sflag [#allocation4], %s893
        %s895 = sand.u32 %s138, 1
        %s896 = scalar_lea.vmem [#allocation3], %s895
        // Predicated region
        $region41: #{net_forward.1} parent=39 // pred_check
          %p897 = pneg %p148
        $region42: #{net_forward.1} parent=39 // pred_check_branch
          %899 = sbr.rel (%p897) target = $region44
        $region43: #{net_forward.1} parent=39 // pred_region
          %901 = vsyncadd %s894, 0
          %s902 = scalar_lea.hbm %s5, %s20
          %s904 = sshll.u32 %s896, 4
          %s905 = int_to_ptr.vmem [resolvable:$true] %s904
          %s906 = sshll.u32 %s902, 4
          %s907 = int_to_ptr.hbm [resolvable:$true] %s906
          %909 = dma.vmem_to_hbm [thread:$0]  %s905, 16, %s907, %s894
        $region44: #{net_forward.1} parent=39 // pred_fallthru
          _
      $region40: #{net_forward.1} parent=5 // pred_fallthru
        _
      %p910 = scmp.le.s32.totalorder 2, %s15
      // Predicated region
      $region45: #{net_forward.1} parent=5 // pred_check
        %p911 = pneg %p910
      $region46: #{net_forward.1} parent=5 // pred_check_branch
        %913 = sbr.rel (%p911) target = $region48
      $region47: #{net_forward.1} parent=5 // pred_region
        %s914 = ssub.s32 %s15, 2
        // Predicated region
        $region49: #{net_forward.1} parent=47 // pred_check
          %p915 = pneg %p154
        $region50: #{net_forward.1} parent=47 // pred_check_branch
          %917 = sbr.rel (%p915) target = $region52
        $region51: #{net_forward.1} parent=47 // pred_region
          %s918 = sand.u32 %s139, 1
          %s919 = scalar_lea.sflag [#allocation4], %s918
          %s920 = sand.u32 %s139, 1
          %s921 = scalar_lea.vmem [#allocation3], %s920
          %923 = dma.done %s919, 16
        $region52: #{net_forward.1} parent=47 // pred_fallthru
          _
      $region48: #{net_forward.1} parent=5 // pred_fallthru
        _
    $region6: #{net_forward.1} parent=1 // loop_footer
      %s19 = sadd.s32 1, %s15
    $region7: #{net_forward.1} parent=1 // loop_footer_branch
      %14 = sbr.rel target = $region3
    $region8: #{net_forward.1} parent=1 // loop_exit
      _
    %924 = vsyncpa [#allocation4], 1
    %s925 = scalar_lea.sflag [#allocation4], 1
    %926 = vsyncpa %s925, 1

</llo_original>
